<compile_context>
chip_gen: v7x
topology: tpu7x:2x2x1
jax: 0.10.0
libtpu: 0.0.40
codegen_flags: <defaults>
</compile_context>

<pallas_src>
import jax
import jax.numpy as jnp
from jax.experimental import pallas as pl
from jax.experimental.pallas import tpu as pltpu


_RELU_AFTER = (True, True, False, True, True, False)  # ReLU after layer i?


def _layer_dims(input_dim):
    return [(input_dim, 64), (64, 32), (32, 16),
            (16, 32), (32, 64), (64, input_dim)]


def _autoencoder_kernel(x_ref, *refs):
    """refs = (w1, b1, ..., w6, b6, out_ref). Weights bf16, biases f32."""
    out_ref = refs[-1]
    param_refs = refs[:-1]

    h = x_ref[...].astype(jnp.bfloat16)
    for layer in range(6):
        w_ref = param_refs[2 * layer]
        b_ref = param_refs[2 * layer + 1]
        # bf16 x bf16 -> f32 accumulate on the MXU, then f32 bias add.
        h = jnp.dot(h, w_ref[...], preferred_element_type=jnp.float32)
        h = h + b_ref[...]
        if _RELU_AFTER[layer]:
            h = jnp.maximum(h, 0.0)          # fused bias + ReLU on the VPU
        if layer < 5:
            h = h.astype(jnp.bfloat16)       # next MXU input
    out_ref[...] = h.astype(out_ref.dtype)


def _round_up(x, m):
    return ((x + m - 1) // m) * m


def autoencoder_forward(x, params, *, tile_b=1024):
    """x: (batch, input_dim) f32; params: flat list [W1,b1,...,W6,b6]."""
    batch, input_dim = x.shape
    dims = _layer_dims(input_dim)

    # Cast weights to the MXU compute dtype once, outside the kernel.
    kernel_params = []
    for w, b in zip(params[0::2], params[1::2]):
        kernel_params += [w.astype(jnp.bfloat16), b.astype(jnp.float32)]

    # Batch tile: multiple of 8 (sublane), capped at tile_b; pad batch to a
    # multiple of the tile so every grid step sees a full block.
    tile_b = max(8, min(tile_b, _round_up(batch, 8)))
    padded_batch = _round_up(batch, tile_b)
    if padded_batch != batch:
        x = jnp.pad(x, ((0, padded_batch - batch), (0, 0)))

    grid = (padded_batch // tile_b,)

    act_spec = pl.BlockSpec((tile_b, input_dim), lambda i: (i, 0))
    const_map = lambda i: (0, 0)
    param_specs = []
    for d_in, d_out in dims:
        param_specs.append(pl.BlockSpec((d_in, d_out), const_map))   # weight
        param_specs.append(pl.BlockSpec((1, d_out), const_map))      # bias

    flops = 2 * padded_batch * sum(di * do for di, do in dims)
    bytes_accessed = (
        padded_batch * input_dim * 4 * 2                     # x in + out
        + sum(di * do * 2 + do * 4 for di, do in dims)       # bf16 W + f32 b
    )
    cost = pl.CostEstimate(flops=flops, transcendentals=0,
                           bytes_accessed=bytes_accessed)

    out = pl.pallas_call(
        _autoencoder_kernel,
        out_shape=jax.ShapeDtypeStruct((padded_batch, input_dim), x.dtype),
        grid=grid,
        in_specs=[act_spec] + param_specs,
        out_specs=act_spec,
        compiler_params=pltpu.CompilerParams(
            dimension_semantics=("parallel",),
        ),
        cost_estimate=cost,
    )(x, *kernel_params)

    if padded_batch != batch:
        out = out[:batch]
    return out


def init_params(input_dim, key):
    """Deterministic init, same shapes as the PyTorch module.

    Weights stored as (in, out); biases as (1, out)."""
    params = []
    for d_in, d_out in _layer_dims(input_dim):
        kw, kb, key = jax.random.split(key, 3)
        bound = 1.0 / (d_in ** 0.5)  # torch nn.Linear default uniform bound
        w = jax.random.uniform(kw, (d_in, d_out), jnp.float32, -bound, bound)
        b = jax.random.uniform(kb, (1, d_out), jnp.float32, -bound, bound)
        params += [w, b]
    return params


def reference_forward(x, params):
    """Pure-JAX f32 reference of the torch forward."""
    h = x
    for i in range(6):
        w, b = params[2 * i], params[2 * i + 1]
        h = h @ w + b
        if _RELU_AFTER[i]:
            h = jnp.maximum(h, 0.0)
    return h


if __name__ == "__main__":
    key = jax.random.PRNGKey(0)
    kx, kp = jax.random.split(key)

    batch, input_dim = 8, 32
    x = jax.random.normal(kx, (batch, input_dim), jnp.float32)
    params = init_params(input_dim, kp)

    out = autoencoder_forward(x, params)
    out = jax.block_until_ready(out)

    ref = reference_forward(x, params)
    assert out.shape == (batch, input_dim)
    # bf16 MXU inputs with f32 accumulation -> loosened tolerance vs f32 ref.
    assert jnp.allclose(out, ref, atol=5e-2, rtol=5e-2)

    print("KERNEL_OK")
</pallas_src>

<mosaic_0001>
module attributes {stable_mosaic.version = 11 : i64} {
  func.func @_autoencoder_kernel(%arg0: i32, %arg1: memref<8x32xf32, #tpu.memory_space<vmem>>, %arg2: memref<32x64xbf16, #tpu.memory_space<vmem>>, %arg3: memref<1x64xf32, #tpu.memory_space<vmem>>, %arg4: memref<64x32xbf16, #tpu.memory_space<vmem>>, %arg5: memref<1x32xf32, #tpu.memory_space<vmem>>, %arg6: memref<32x16xbf16, #tpu.memory_space<vmem>>, %arg7: memref<1x16xf32, #tpu.memory_space<vmem>>, %arg8: memref<16x32xbf16, #tpu.memory_space<vmem>>, %arg9: memref<1x32xf32, #tpu.memory_space<vmem>>, %arg10: memref<32x64xbf16, #tpu.memory_space<vmem>>, %arg11: memref<1x64xf32, #tpu.memory_space<vmem>>, %arg12: memref<64x32xbf16, #tpu.memory_space<vmem>>, %arg13: memref<1x32xf32, #tpu.memory_space<vmem>>, %arg14: memref<8x32xf32, #tpu.memory_space<vmem>>) attributes {dimension_semantics = [#tpu.dimension_semantics<parallel>], iteration_bounds = array<i64: 1>, scalar_prefetch = 0 : i64, scratch_operands = 0 : i64, tpu.core_type = #tpu.core_type<tc>, window_params = [{transform_indices = @transform_0, window_bounds = array<i64: 8, 32>}, {pipeline_mode = #tpu.pipeline_mode<synchronous>, transform_indices = @transform_1, window_bounds = array<i64: 32, 64>}, {pipeline_mode = #tpu.pipeline_mode<synchronous>, transform_indices = @transform_2, window_bounds = array<i64: 1, 64>}, {pipeline_mode = #tpu.pipeline_mode<synchronous>, transform_indices = @transform_3, window_bounds = array<i64: 64, 32>}, {pipeline_mode = #tpu.pipeline_mode<synchronous>, transform_indices = @transform_4, window_bounds = array<i64: 1, 32>}, {pipeline_mode = #tpu.pipeline_mode<synchronous>, transform_indices = @transform_5, window_bounds = array<i64: 32, 16>}, {pipeline_mode = #tpu.pipeline_mode<synchronous>, transform_indices = @transform_6, window_bounds = array<i64: 1, 16>}, {pipeline_mode = #tpu.pipeline_mode<synchronous>, transform_indices = @transform_7, window_bounds = array<i64: 16, 32>}, {pipeline_mode = #tpu.pipeline_mode<synchronous>, transform_indices = @transform_8, window_bounds = array<i64: 1, 32>}, {pipeline_mode = #tpu.pipeline_mode<synchronous>, transform_indices = @transform_9, window_bounds = array<i64: 32, 64>}, {pipeline_mode = #tpu.pipeline_mode<synchronous>, transform_indices = @transform_10, window_bounds = array<i64: 1, 64>}, {pipeline_mode = #tpu.pipeline_mode<synchronous>, transform_indices = @transform_11, window_bounds = array<i64: 64, 32>}, {pipeline_mode = #tpu.pipeline_mode<synchronous>, transform_indices = @transform_12, window_bounds = array<i64: 1, 32>}, {transform_indices = @transform_13, window_bounds = array<i64: 8, 32>}]} {
    %c0 = arith.constant 0 : index
    %c0_0 = arith.constant 0 : index
    %0 = vector.load %arg1[%c0, %c0_0] : memref<8x32xf32, #tpu.memory_space<vmem>>, vector<8x32xf32>
    %1 = arith.truncf %0 : vector<8x32xf32> to vector<8x32xbf16>
    %c0_1 = arith.constant 0 : index
    %c0_2 = arith.constant 0 : index
    %2 = vector.load %arg2[%c0_1, %c0_2] : memref<32x64xbf16, #tpu.memory_space<vmem>>, vector<32x64xbf16>
    %cst = arith.constant dense<0.000000e+00> : vector<8x64xf32>
    %3 = tpu.matmul %1, %2, %cst {dimension_numbers = #tpu.dot_dimension_numbers<[1], [0], [0], [1], [0, 0, 1, 1], [], []>} : vector<8x32xbf16>, vector<32x64xbf16>, vector<8x64xf32> -> vector<8x64xf32>
    %c0_3 = arith.constant 0 : index
    %c0_4 = arith.constant 0 : index
    %4 = vector.load %arg3[%c0_3, %c0_4] : memref<1x64xf32, #tpu.memory_space<vmem>>, vector<1x64xf32>
    %5 = vector.broadcast %4 : vector<1x64xf32> to vector<8x64xf32>
    %6 = arith.addf %3, %5 : vector<8x64xf32>
    %cst_5 = arith.constant 0.000000e+00 : f32
    %7 = vector.broadcast %cst_5 : f32 to vector<8x64xf32>
    %8 = arith.maximumf %6, %7 : vector<8x64xf32>
    %9 = arith.truncf %8 : vector<8x64xf32> to vector<8x64xbf16>
    %c0_6 = arith.constant 0 : index
    %c0_7 = arith.constant 0 : index
    %10 = vector.load %arg4[%c0_6, %c0_7] : memref<64x32xbf16, #tpu.memory_space<vmem>>, vector<64x32xbf16>
    %cst_8 = arith.constant dense<0.000000e+00> : vector<8x32xf32>
    %11 = tpu.matmul %9, %10, %cst_8 {dimension_numbers = #tpu.dot_dimension_numbers<[1], [0], [0], [1], [0, 0, 1, 1], [], []>} : vector<8x64xbf16>, vector<64x32xbf16>, vector<8x32xf32> -> vector<8x32xf32>
    %c0_9 = arith.constant 0 : index
    %c0_10 = arith.constant 0 : index
    %12 = vector.load %arg5[%c0_9, %c0_10] : memref<1x32xf32, #tpu.memory_space<vmem>>, vector<1x32xf32>
    %13 = vector.broadcast %12 : vector<1x32xf32> to vector<8x32xf32>
    %14 = arith.addf %11, %13 : vector<8x32xf32>
    %cst_11 = arith.constant 0.000000e+00 : f32
    %15 = vector.broadcast %cst_11 : f32 to vector<8x32xf32>
    %16 = arith.maximumf %14, %15 : vector<8x32xf32>
    %17 = arith.truncf %16 : vector<8x32xf32> to vector<8x32xbf16>
    %c0_12 = arith.constant 0 : index
    %c0_13 = arith.constant 0 : index
    %18 = vector.load %arg6[%c0_12, %c0_13] : memref<32x16xbf16, #tpu.memory_space<vmem>>, vector<32x16xbf16>
    %cst_14 = arith.constant dense<0.000000e+00> : vector<8x16xf32>
    %19 = tpu.matmul %17, %18, %cst_14 {dimension_numbers = #tpu.dot_dimension_numbers<[1], [0], [0], [1], [0, 0, 1, 1], [], []>} : vector<8x32xbf16>, vector<32x16xbf16>, vector<8x16xf32> -> vector<8x16xf32>
    %c0_15 = arith.constant 0 : index
    %c0_16 = arith.constant 0 : index
    %20 = vector.load %arg7[%c0_15, %c0_16] : memref<1x16xf32, #tpu.memory_space<vmem>>, vector<1x16xf32>
    %21 = vector.broadcast %20 : vector<1x16xf32> to vector<8x16xf32>
    %22 = arith.addf %19, %21 : vector<8x16xf32>
    %23 = arith.truncf %22 : vector<8x16xf32> to vector<8x16xbf16>
    %c0_17 = arith.constant 0 : index
    %c0_18 = arith.constant 0 : index
    %24 = vector.load %arg8[%c0_17, %c0_18] : memref<16x32xbf16, #tpu.memory_space<vmem>>, vector<16x32xbf16>
    %cst_19 = arith.constant dense<0.000000e+00> : vector<8x32xf32>
    %25 = tpu.matmul %23, %24, %cst_19 {dimension_numbers = #tpu.dot_dimension_numbers<[1], [0], [0], [1], [0, 0, 1, 1], [], []>} : vector<8x16xbf16>, vector<16x32xbf16>, vector<8x32xf32> -> vector<8x32xf32>
    %c0_20 = arith.constant 0 : index
    %c0_21 = arith.constant 0 : index
    %26 = vector.load %arg9[%c0_20, %c0_21] : memref<1x32xf32, #tpu.memory_space<vmem>>, vector<1x32xf32>
    %27 = vector.broadcast %26 : vector<1x32xf32> to vector<8x32xf32>
    %28 = arith.addf %25, %27 : vector<8x32xf32>
    %cst_22 = arith.constant 0.000000e+00 : f32
    %29 = vector.broadcast %cst_22 : f32 to vector<8x32xf32>
    %30 = arith.maximumf %28, %29 : vector<8x32xf32>
    %31 = arith.truncf %30 : vector<8x32xf32> to vector<8x32xbf16>
    %c0_23 = arith.constant 0 : index
    %c0_24 = arith.constant 0 : index
    %32 = vector.load %arg10[%c0_23, %c0_24] : memref<32x64xbf16, #tpu.memory_space<vmem>>, vector<32x64xbf16>
    %cst_25 = arith.constant dense<0.000000e+00> : vector<8x64xf32>
    %33 = tpu.matmul %31, %32, %cst_25 {dimension_numbers = #tpu.dot_dimension_numbers<[1], [0], [0], [1], [0, 0, 1, 1], [], []>} : vector<8x32xbf16>, vector<32x64xbf16>, vector<8x64xf32> -> vector<8x64xf32>
    %c0_26 = arith.constant 0 : index
    %c0_27 = arith.constant 0 : index
    %34 = vector.load %arg11[%c0_26, %c0_27] : memref<1x64xf32, #tpu.memory_space<vmem>>, vector<1x64xf32>
    %35 = vector.broadcast %34 : vector<1x64xf32> to vector<8x64xf32>
    %36 = arith.addf %33, %35 : vector<8x64xf32>
    %cst_28 = arith.constant 0.000000e+00 : f32
    %37 = vector.broadcast %cst_28 : f32 to vector<8x64xf32>
    %38 = arith.maximumf %36, %37 : vector<8x64xf32>
    %39 = arith.truncf %38 : vector<8x64xf32> to vector<8x64xbf16>
    %c0_29 = arith.constant 0 : index
    %c0_30 = arith.constant 0 : index
    %40 = vector.load %arg12[%c0_29, %c0_30] : memref<64x32xbf16, #tpu.memory_space<vmem>>, vector<64x32xbf16>
    %cst_31 = arith.constant dense<0.000000e+00> : vector<8x32xf32>
    %41 = tpu.matmul %39, %40, %cst_31 {dimension_numbers = #tpu.dot_dimension_numbers<[1], [0], [0], [1], [0, 0, 1, 1], [], []>} : vector<8x64xbf16>, vector<64x32xbf16>, vector<8x32xf32> -> vector<8x32xf32>
    %c0_32 = arith.constant 0 : index
    %c0_33 = arith.constant 0 : index
    %42 = vector.load %arg13[%c0_32, %c0_33] : memref<1x32xf32, #tpu.memory_space<vmem>>, vector<1x32xf32>
    %43 = vector.broadcast %42 : vector<1x32xf32> to vector<8x32xf32>
    %44 = arith.addf %41, %43 : vector<8x32xf32>
    %c0_34 = arith.constant 0 : index
    %c0_35 = arith.constant 0 : index
    %45 = vector.load %arg14[%c0_34, %c0_35] : memref<8x32xf32, #tpu.memory_space<vmem>>, vector<8x32xf32>
    tpu.vector_store %arg14[%c0_34, %c0_35], %44 {strides = array<i32>} : memref<8x32xf32, #tpu.memory_space<vmem>>, vector<8x32xf32>,
    return
  }
  func.func @transform_0(%arg0: i32) -> (i32, i32) {
    %c0_i32 = arith.constant 0 : i32
    %c0_i32_0 = arith.constant 0 : i32
    return %arg0, %c0_i32 : i32, i32
  }
  func.func @transform_1(%arg0: i32) -> (i32, i32) {
    %c0_i32 = arith.constant 0 : i32
    %c0_i32_0 = arith.constant 0 : i32
    %c0_i32_1 = arith.constant 0 : i32
    return %c0_i32, %c0_i32_0 : i32, i32
  }
  func.func @transform_2(%arg0: i32) -> (i32, i32) {
    %c0_i32 = arith.constant 0 : i32
    %c0_i32_0 = arith.constant 0 : i32
    %c0_i32_1 = arith.constant 0 : i32
    return %c0_i32, %c0_i32_0 : i32, i32
  }
  func.func @transform_3(%arg0: i32) -> (i32, i32) {
    %c0_i32 = arith.constant 0 : i32
    %c0_i32_0 = arith.constant 0 : i32
    %c0_i32_1 = arith.constant 0 : i32
    return %c0_i32, %c0_i32_0 : i32, i32
  }
  func.func @transform_4(%arg0: i32) -> (i32, i32) {
    %c0_i32 = arith.constant 0 : i32
    %c0_i32_0 = arith.constant 0 : i32
    %c0_i32_1 = arith.constant 0 : i32
    return %c0_i32, %c0_i32_0 : i32, i32
  }
  func.func @transform_5(%arg0: i32) -> (i32, i32) {
    %c0_i32 = arith.constant 0 : i32
    %c0_i32_0 = arith.constant 0 : i32
    %c0_i32_1 = arith.constant 0 : i32
    return %c0_i32, %c0_i32_0 : i32, i32
  }
  func.func @transform_6(%arg0: i32) -> (i32, i32) {
    %c0_i32 = arith.constant 0 : i32
    %c0_i32_0 = arith.constant 0 : i32
    %c0_i32_1 = arith.constant 0 : i32
    return %c0_i32, %c0_i32_0 : i32, i32
  }
  func.func @transform_7(%arg0: i32) -> (i32, i32) {
    %c0_i32 = arith.constant 0 : i32
    %c0_i32_0 = arith.constant 0 : i32
    %c0_i32_1 = arith.constant 0 : i32
    return %c0_i32, %c0_i32_0 : i32, i32
  }
  func.func @transform_8(%arg0: i32) -> (i32, i32) {
    %c0_i32 = arith.constant 0 : i32
    %c0_i32_0 = arith.constant 0 : i32
    %c0_i32_1 = arith.constant 0 : i32
    return %c0_i32, %c0_i32_0 : i32, i32
  }
  func.func @transform_9(%arg0: i32) -> (i32, i32) {
    %c0_i32 = arith.constant 0 : i32
    %c0_i32_0 = arith.constant 0 : i32
    %c0_i32_1 = arith.constant 0 : i32
    return %c0_i32, %c0_i32_0 : i32, i32
  }
  func.func @transform_10(%arg0: i32) -> (i32, i32) {
    %c0_i32 = arith.constant 0 : i32
    %c0_i32_0 = arith.constant 0 : i32
    %c0_i32_1 = arith.constant 0 : i32
    return %c0_i32, %c0_i32_0 : i32, i32
  }
  func.func @transform_11(%arg0: i32) -> (i32, i32) {
    %c0_i32 = arith.constant 0 : i32
    %c0_i32_0 = arith.constant 0 : i32
    %c0_i32_1 = arith.constant 0 : i32
    return %c0_i32, %c0_i32_0 : i32, i32
  }
  func.func @transform_12(%arg0: i32) -> (i32, i32) {
    %c0_i32 = arith.constant 0 : i32
    %c0_i32_0 = arith.constant 0 : i32
    %c0_i32_1 = arith.constant 0 : i32
    return %c0_i32, %c0_i32_0 : i32, i32
  }
  func.func @transform_13(%arg0: i32) -> (i32, i32) {
    %c0_i32 = arith.constant 0 : i32
    %c0_i32_0 = arith.constant 0 : i32
    return %arg0, %c0_i32 : i32, i32
  }
}

</mosaic_0001>

<llo_original>
// kernel: tpu_custom_call.1
$region0: #{tpu_custom_call.1}
  #allocation0 [shape = 'u32[]', space=smem, size = 0x4, offset = 0x4, fixed_abs, tag = 'smem constant byte address 0x4 - core index']
  #allocation1 [shape = 'u32[144,128]{1,0:T(1,128)}', space=vmem, size = 0x12000, scoped, tag = 'internal scratch']
  %s0 = inlined_call_operand.vmem [shape: f32[8,32], index: 0, kind: input, shape index: {}]
  %s1 = inlined_call_operand.vmem [shape: bf16[32,64], index: 1, kind: input, shape index: {}]
  %s2 = inlined_call_operand.vmem [shape: f32[1,64], index: 2, kind: input, shape index: {}]
  %s3 = inlined_call_operand.vmem [shape: bf16[64,32], index: 3, kind: input, shape index: {}]
  %s4 = inlined_call_operand.vmem [shape: f32[1,32], index: 4, kind: input, shape index: {}]
  %s5 = inlined_call_operand.vmem [shape: bf16[32,16], index: 5, kind: input, shape index: {}]
  %s6 = inlined_call_operand.vmem [shape: f32[1,16], index: 6, kind: input, shape index: {}]
  %s7 = inlined_call_operand.vmem [shape: bf16[16,32], index: 7, kind: input, shape index: {}]
  %s8 = inlined_call_operand.vmem [shape: f32[1,32], index: 8, kind: input, shape index: {}]
  %s9 = inlined_call_operand.vmem [shape: bf16[32,64], index: 9, kind: input, shape index: {}]
  %s10 = inlined_call_operand.vmem [shape: f32[1,64], index: 10, kind: input, shape index: {}]
  %s11 = inlined_call_operand.vmem [shape: bf16[64,32], index: 11, kind: input, shape index: {}]
  %s12 = inlined_call_operand.vmem [shape: f32[1,32], index: 12, kind: input, shape index: {}]
  %s13 = inlined_call_operand.hbm [shape: f32[8,32], index: 13, kind: output, shape index: {}]
  %s14 = sld [smem:[#allocation0]]
  $region62: #{tpu_custom_call.1} parent=0
    _
  %s16 = ssub.s32 1, %s14
  %s17 = scalar_select 0, %s16, %s14
  $region1: #{tpu_custom_call.1} parent=0
    #allocation2 [shape = 'u8[4096]{0}', space=vmem, size = 0x1000, scoped, tag = 'output window, operand 0, single buffered']
    #allocation3 [shape = 's32[1]{0}', space=sflag, size = 0x4, scoped, tag = 'scoped memory for tpu_custom_call.1']
    %18 = vsyncpa [#allocation3], 0
    // Predicated region
    $region2: #{tpu_custom_call.1} parent=1 // pred_check
      _
    $region3: #{tpu_custom_call.1} parent=1 // pred_check_branch
      %20 = sbr.rel (0) target = $region5
    $region4: #{tpu_custom_call.1} parent=1 // pred_region
      _
    $region5: #{tpu_custom_call.1} parent=1 // pred_fallthru
      _
    // Predicated region
    $region6: #{tpu_custom_call.1} parent=1 // pred_check
      _
    $region7: #{tpu_custom_call.1} parent=1 // pred_check_branch
      %22 = sbr.rel (0) target = $region9
    $region8: #{tpu_custom_call.1} parent=1 // pred_region
      _
    $region9: #{tpu_custom_call.1} parent=1 // pred_fallthru
      _
    // Predicated region
    $region10: #{tpu_custom_call.1} parent=1 // pred_check
      _
    $region11: #{tpu_custom_call.1} parent=1 // pred_check_branch
      %24 = sbr.rel (0) target = $region13
    $region12: #{tpu_custom_call.1} parent=1 // pred_region
      _
    $region13: #{tpu_custom_call.1} parent=1 // pred_fallthru
      _
    // Predicated region
    $region14: #{tpu_custom_call.1} parent=1 // pred_check
      _
    $region15: #{tpu_custom_call.1} parent=1 // pred_check_branch
      %26 = sbr.rel (0) target = $region17
    $region16: #{tpu_custom_call.1} parent=1 // pred_region
      _
    $region17: #{tpu_custom_call.1} parent=1 // pred_fallthru
      _
    // Predicated region
    $region18: #{tpu_custom_call.1} parent=1 // pred_check
      _
    $region19: #{tpu_custom_call.1} parent=1 // pred_check_branch
      %28 = sbr.rel (0) target = $region21
    $region20: #{tpu_custom_call.1} parent=1 // pred_region
      _
    $region21: #{tpu_custom_call.1} parent=1 // pred_fallthru
      _
    // Predicated region
    $region22: #{tpu_custom_call.1} parent=1 // pred_check
      _
    $region23: #{tpu_custom_call.1} parent=1 // pred_check_branch
      %30 = sbr.rel (0) target = $region25
    $region24: #{tpu_custom_call.1} parent=1 // pred_region
      _
    $region25: #{tpu_custom_call.1} parent=1 // pred_fallthru
      _
    // Predicated region
    $region26: #{tpu_custom_call.1} parent=1 // pred_check
      _
    $region27: #{tpu_custom_call.1} parent=1 // pred_check_branch
      %32 = sbr.rel (0) target = $region29
    $region28: #{tpu_custom_call.1} parent=1 // pred_region
      _
    $region29: #{tpu_custom_call.1} parent=1 // pred_fallthru
      _
    // Predicated region
    $region30: #{tpu_custom_call.1} parent=1 // pred_check
      _
    $region31: #{tpu_custom_call.1} parent=1 // pred_check_branch
      %34 = sbr.rel (0) target = $region33
    $region32: #{tpu_custom_call.1} parent=1 // pred_region
      _
    $region33: #{tpu_custom_call.1} parent=1 // pred_fallthru
      _
    // Predicated region
    $region34: #{tpu_custom_call.1} parent=1 // pred_check
      _
    $region35: #{tpu_custom_call.1} parent=1 // pred_check_branch
      %36 = sbr.rel (0) target = $region37
    $region36: #{tpu_custom_call.1} parent=1 // pred_region
      _
    $region37: #{tpu_custom_call.1} parent=1 // pred_fallthru
      _
    // Predicated region
    $region38: #{tpu_custom_call.1} parent=1 // pred_check
      _
    $region39: #{tpu_custom_call.1} parent=1 // pred_check_branch
      %38 = sbr.rel (0) target = $region41
    $region40: #{tpu_custom_call.1} parent=1 // pred_region
      _
    $region41: #{tpu_custom_call.1} parent=1 // pred_fallthru
      _
    // Predicated region
    $region42: #{tpu_custom_call.1} parent=1 // pred_check
      _
    $region43: #{tpu_custom_call.1} parent=1 // pred_check_branch
      %40 = sbr.rel (0) target = $region45
    $region44: #{tpu_custom_call.1} parent=1 // pred_region
      _
    $region45: #{tpu_custom_call.1} parent=1 // pred_fallthru
      _
    // Predicated region
    $region46: #{tpu_custom_call.1} parent=1 // pred_check
      _
    $region47: #{tpu_custom_call.1} parent=1 // pred_check_branch
      %42 = sbr.rel (0) target = $region49
    $region48: #{tpu_custom_call.1} parent=1 // pred_region
      _
    $region49: #{tpu_custom_call.1} parent=1 // pred_fallthru
      _
    // Predicated region
    $region50: #{tpu_custom_call.1} parent=1 // pred_check
      _
    $region51: #{tpu_custom_call.1} parent=1 // pred_check_branch
      %44 = sbr.rel (0) target = $region53
    $region52: #{tpu_custom_call.1} parent=1 // pred_region
      _
    $region53: #{tpu_custom_call.1} parent=1 // pred_fallthru
      _
    %v46 = vld [vmem:[%s0] sm:$0xff]
    %v47 = vpack.c.bf16 %v46, %v46
    %v48 = vld [vmem:[%s1] sm:$0xf]
    %v49 = vld [vmem:[%s1 + $0x4] sm:$0xf]
    %v50 = vld [vmem:[%s1 + $0x8] sm:$0xf]
    %v51 = vld [vmem:[%s1 + $0xc] sm:$0xf]
    %v52 = vld [vmem:[%s2] sm:$0x1]
    %v54 = vlaneseq
    %v55 = vshrl.u32 %v54, 7
    %v56 = vsub.s32 0, %v55
    %v57 = vrot.slane %v52, %v56
    %v63 = vunpack.c.l.b16 %v48
    %v64 = vunpack.c.l.b16 %v49
    %v65 = vunpack.c.l.b16 %v50
    %v66 = vunpack.c.l.b16 %v51
    %v67 = vpack.c.b16 %v64, %v63
    %v68 = vpack.c.b16 %v66, %v65
    %vm71 = vcmask 261120
    %v73 = vsel %vm71, %v47, 0
    %75 = vmatprep.subr.bf16.mxu0 0
    %76 = vmatpush1.bf16.msra.mxu0 %v67
    %77 = vmatprep.subr.bf16.mxu0 0
    %78 = vmatpush1.bf16.msra.mxu0 %v68
    %79 = vmatprep.subr.bf16.mxu0 0
    %80 = vmatpush1.bf16.msra.mxu0 0
    %81 = vmatprep.subr.bf16.mxu0 0
    %82 = vmatpush1.bf16.msra.mxu0 0
    %83 = vmatprep.subr.bf16.mxu0 0
    %84 = vmatpush1.bf16.msra.mxu0 0
    %85 = vmatprep.subr.bf16.mxu0 0
    %86 = vmatpush1.bf16.msra.mxu0 0
    %87 = vmatprep.subr.bf16.mxu0 0
    %88 = vmatpush1.bf16.msra.mxu0 0
    %89 = vmatprep.subr.bf16.mxu0 0
    %90 = vmatpush1.bf16.msra.mxu0 0
    %91 = vmatprep.subr.bf16.mxu0 0
    %92 = vmatpush1.bf16.msra.mxu0 0
    %93 = vmatprep.subr.bf16.mxu0 0
    %94 = vmatpush1.bf16.msra.mxu0 0
    %95 = vmatprep.subr.bf16.mxu0 0
    %96 = vmatpush1.bf16.msra.mxu0 0
    %97 = vmatprep.subr.bf16.mxu0 0
    %98 = vmatpush1.bf16.msra.mxu0 0
    %99 = vmatprep.subr.bf16.mxu0 0
    %100 = vmatpush1.bf16.msra.mxu0 0
    %101 = vmatprep.subr.bf16.mxu0 0
    %102 = vmatpush1.bf16.msra.mxu0 0
    %103 = vmatprep.subr.bf16.mxu0 0
    %104 = vmatpush1.bf16.msra.mxu0 0
    %105 = vmatprep.subr.bf16.mxu0 0
    %106 = vmatpush1.bf16.msra.mxu0 0
    %107 = vmatprep.mubr.bf16.mxu0 0
    %108 = vmatmul.mubr.bf16.gmra.mrb[0].mxu0 %v73
    %v109 = vpop.f32.mrb[0].mxu0
    %v110 = vadd.f32 %v57, %v109
    %v111 = vpop.f32.mrb[0].mxu0
    %v112 = vpop.f32.mrb[0].mxu0
    %v113 = vpop.f32.mrb[0].mxu0
    %114 = vdwg.mxu0
    %v115 = vmax.f32 %v110, 0.0
    %v116 = vpack.c.bf16 %v115, %v115
    %v117 = vld [vmem:[%s3] sm:$0xf]
    %v118 = vld [vmem:[%s3 + $0x4] sm:$0xf]
    %v119 = vld [vmem:[%s3 + $0x8] sm:$0xf]
    %v120 = vld [vmem:[%s3 + $0xc] sm:$0xf]
    %v121 = vld [vmem:[%s3 + $0x10] sm:$0xf]
    %v122 = vld [vmem:[%s3 + $0x14] sm:$0xf]
    %v123 = vld [vmem:[%s3 + $0x18] sm:$0xf]
    %v124 = vld [vmem:[%s3 + $0x1c] sm:$0xf]
    %v125 = vld [vmem:[%s4] sm:$0x1]
    %v127 = vlaneseq
    %v128 = vshrl.u32 %v127, 7
    %v129 = vsub.s32 0, %v128
    %v130 = vrot.slane %v125, %v129
    %v140 = vunpack.c.l.b16 %v117
    %v141 = vunpack.c.l.b16 %v118
    %v142 = vunpack.c.l.b16 %v119
    %v143 = vunpack.c.l.b16 %v120
    %v144 = vunpack.c.l.b16 %v121
    %v145 = vunpack.c.l.b16 %v122
    %v146 = vunpack.c.l.b16 %v123
    %v147 = vunpack.c.l.b16 %v124
    %v148 = vpack.c.b16 %v141, %v140
    %v149 = vpack.c.b16 %v143, %v142
    %v150 = vpack.c.b16 %v145, %v144
    %v151 = vpack.c.b16 %v147, %v146
    %vm156 = vcmask 523264
    %v158 = vsel %vm156, %v116, 0
    %160 = vmatprep.subr.bf16.mxu0 0
    %161 = vmatpush1.bf16.msra.mxu0 %v148
    %162 = vmatprep.subr.bf16.mxu0 0
    %163 = vmatpush1.bf16.msra.mxu0 %v149
    %164 = vmatprep.subr.bf16.mxu0 0
    %165 = vmatpush1.bf16.msra.mxu0 %v150
    %166 = vmatprep.subr.bf16.mxu0 0
    %167 = vmatpush1.bf16.msra.mxu0 %v151
    %168 = vmatprep.subr.bf16.mxu0 0
    %169 = vmatpush1.bf16.msra.mxu0 0
    %170 = vmatprep.subr.bf16.mxu0 0
    %171 = vmatpush1.bf16.msra.mxu0 0
    %172 = vmatprep.subr.bf16.mxu0 0
    %173 = vmatpush1.bf16.msra.mxu0 0
    %174 = vmatprep.subr.bf16.mxu0 0
    %175 = vmatpush1.bf16.msra.mxu0 0
    %176 = vmatprep.subr.bf16.mxu0 0
    %177 = vmatpush1.bf16.msra.mxu0 0
    %178 = vmatprep.subr.bf16.mxu0 0
    %179 = vmatpush1.bf16.msra.mxu0 0
    %180 = vmatprep.subr.bf16.mxu0 0
    %181 = vmatpush1.bf16.msra.mxu0 0
    %182 = vmatprep.subr.bf16.mxu0 0
    %183 = vmatpush1.bf16.msra.mxu0 0
    %184 = vmatprep.subr.bf16.mxu0 0
    %185 = vmatpush1.bf16.msra.mxu0 0
    %186 = vmatprep.subr.bf16.mxu0 0
    %187 = vmatpush1.bf16.msra.mxu0 0
    %188 = vmatprep.subr.bf16.mxu0 0
    %189 = vmatpush1.bf16.msra.mxu0 0
    %190 = vmatprep.subr.bf16.mxu0 0
    %191 = vmatpush1.bf16.msra.mxu0 0
    %192 = vmatprep.mubr.bf16.mxu0 0
    %193 = vmatmul.mubr.bf16.gmra.mrb[0].mxu0 %v158
    %v194 = vpop.f32.mrb[0].mxu0
    %v195 = vadd.f32 %v130, %v194
    %v196 = vpop.f32.mrb[0].mxu0
    %v197 = vpop.f32.mrb[0].mxu0
    %v198 = vpop.f32.mrb[0].mxu0
    %199 = vdwg.mxu0
    %v200 = vmax.f32 %v195, 0.0
    %v201 = vpack.c.bf16 %v200, %v200
    %v202 = vld [vmem:[%s5] sm:$0xf]
    %v203 = vld [vmem:[%s5 + $0x4] sm:$0xf]
    %v204 = vld [vmem:[%s5 + $0x8] sm:$0xf]
    %v205 = vld [vmem:[%s5 + $0xc] sm:$0xf]
    %v206 = vld [vmem:[%s6] sm:$0x1]
    %v208 = vlaneseq
    %v209 = vshrl.u32 %v208, 7
    %v210 = vsub.s32 0, %v209
    %v211 = vrot.slane %v206, %v210
    %v217 = vunpack.c.l.b16 %v202
    %v218 = vunpack.c.l.b16 %v203
    %v219 = vunpack.c.l.b16 %v204
    %v220 = vunpack.c.l.b16 %v205
    %v221 = vpack.c.b16 %v218, %v217
    %v222 = vpack.c.b16 %v220, %v219
    %v226 = vsel %vm71, %v201, 0
    %228 = vmatprep.subr.bf16.mxu0 0
    %229 = vmatpush1.bf16.msra.mxu0 %v221
    %230 = vmatprep.subr.bf16.mxu0 0
    %231 = vmatpush1.bf16.msra.mxu0 %v222
    %232 = vmatprep.subr.bf16.mxu0 0
    %233 = vmatpush1.bf16.msra.mxu0 0
    %234 = vmatprep.subr.bf16.mxu0 0
    %235 = vmatpush1.bf16.msra.mxu0 0
    %236 = vmatprep.subr.bf16.mxu0 0
    %237 = vmatpush1.bf16.msra.mxu0 0
    %238 = vmatprep.subr.bf16.mxu0 0
    %239 = vmatpush1.bf16.msra.mxu0 0
    %240 = vmatprep.subr.bf16.mxu0 0
    %241 = vmatpush1.bf16.msra.mxu0 0
    %242 = vmatprep.subr.bf16.mxu0 0
    %243 = vmatpush1.bf16.msra.mxu0 0
    %244 = vmatprep.subr.bf16.mxu0 0
    %245 = vmatpush1.bf16.msra.mxu0 0
    %246 = vmatprep.subr.bf16.mxu0 0
    %247 = vmatpush1.bf16.msra.mxu0 0
    %248 = vmatprep.subr.bf16.mxu0 0
    %249 = vmatpush1.bf16.msra.mxu0 0
    %250 = vmatprep.subr.bf16.mxu0 0
    %251 = vmatpush1.bf16.msra.mxu0 0
    %252 = vmatprep.subr.bf16.mxu0 0
    %253 = vmatpush1.bf16.msra.mxu0 0
    %254 = vmatprep.subr.bf16.mxu0 0
    %255 = vmatpush1.bf16.msra.mxu0 0
    %256 = vmatprep.subr.bf16.mxu0 0
    %257 = vmatpush1.bf16.msra.mxu0 0
    %258 = vmatprep.subr.bf16.mxu0 0
    %259 = vmatpush1.bf16.msra.mxu0 0
    %260 = vmatprep.mubr.bf16.mxu0 0
    %261 = vmatmul.mubr.bf16.gmra.mrb[0].mxu0 %v226
    %v262 = vpop.f32.mrb[0].mxu0
    %v263 = vadd.f32 %v211, %v262
    %v264 = vpop.f32.mrb[0].mxu0
    %v265 = vpop.f32.mrb[0].mxu0
    %v266 = vpop.f32.mrb[0].mxu0
    %267 = vdwg.mxu0
    %v268 = vpack.c.bf16 %v263, %v263
    %v269 = vld [vmem:[%s7] sm:$0xf]
    %v270 = vld [vmem:[%s7 + $0x4] sm:$0xf]
    %v271 = vld [vmem:[%s8] sm:$0x1]
    %v273 = vlaneseq
    %v274 = vshrl.u32 %v273, 7
    %v275 = vsub.s32 0, %v274
    %v276 = vrot.slane %v271, %v275
    %v280 = vunpack.c.l.b16 %v269
    %v281 = vunpack.c.l.b16 %v270
    %v282 = vpack.c.b16 %v281, %v280
    %vm284 = vcmask 130048
    %v286 = vsel %vm284, %v268, 0
    %288 = vmatprep.subr.bf16.mxu0 0
    %289 = vmatpush1.bf16.msra.mxu0 %v282
    %290 = vmatprep.subr.bf16.mxu0 0
    %291 = vmatpush1.bf16.msra.mxu0 0
    %292 = vmatprep.subr.bf16.mxu0 0
    %293 = vmatpush1.bf16.msra.mxu0 0
    %294 = vmatprep.subr.bf16.mxu0 0
    %295 = vmatpush1.bf16.msra.mxu0 0
    %296 = vmatprep.subr.bf16.mxu0 0
    %297 = vmatpush1.bf16.msra.mxu0 0
    %298 = vmatprep.subr.bf16.mxu0 0
    %299 = vmatpush1.bf16.msra.mxu0 0
    %300 = vmatprep.subr.bf16.mxu0 0
    %301 = vmatpush1.bf16.msra.mxu0 0
    %302 = vmatprep.subr.bf16.mxu0 0
    %303 = vmatpush1.bf16.msra.mxu0 0
    %304 = vmatprep.subr.bf16.mxu0 0
    %305 = vmatpush1.bf16.msra.mxu0 0
    %306 = vmatprep.subr.bf16.mxu0 0
    %307 = vmatpush1.bf16.msra.mxu0 0
    %308 = vmatprep.subr.bf16.mxu0 0
    %309 = vmatpush1.bf16.msra.mxu0 0
    %310 = vmatprep.subr.bf16.mxu0 0
    %311 = vmatpush1.bf16.msra.mxu0 0
    %312 = vmatprep.subr.bf16.mxu0 0
    %313 = vmatpush1.bf16.msra.mxu0 0
    %314 = vmatprep.subr.bf16.mxu0 0
    %315 = vmatpush1.bf16.msra.mxu0 0
    %316 = vmatprep.subr.bf16.mxu0 0
    %317 = vmatpush1.bf16.msra.mxu0 0
    %318 = vmatprep.subr.bf16.mxu0 0
    %319 = vmatpush1.bf16.msra.mxu0 0
    %320 = vmatprep.mubr.bf16.mxu0 0
    %321 = vmatmul.mubr.bf16.gmra.mrb[0].mxu0 %v286
    %v322 = vpop.f32.mrb[0].mxu0
    %v323 = vadd.f32 %v276, %v322
    %v324 = vpop.f32.mrb[0].mxu0
    %v325 = vpop.f32.mrb[0].mxu0
    %v326 = vpop.f32.mrb[0].mxu0
    %327 = vdwg.mxu0
    %v328 = vmax.f32 %v323, 0.0
    %v329 = vpack.c.bf16 %v328, %v328
    %v330 = vld [vmem:[%s9] sm:$0xf]
    %v331 = vld [vmem:[%s9 + $0x4] sm:$0xf]
    %v332 = vld [vmem:[%s9 + $0x8] sm:$0xf]
    %v333 = vld [vmem:[%s9 + $0xc] sm:$0xf]
    %v334 = vld [vmem:[%s10] sm:$0x1]
    %v336 = vlaneseq
    %v337 = vshrl.u32 %v336, 7
    %v338 = vsub.s32 0, %v337
    %v339 = vrot.slane %v334, %v338
    %v345 = vunpack.c.l.b16 %v330
    %v346 = vunpack.c.l.b16 %v331
    %v347 = vunpack.c.l.b16 %v332
    %v348 = vunpack.c.l.b16 %v333
    %v349 = vpack.c.b16 %v346, %v345
    %v350 = vpack.c.b16 %v348, %v347
    %v354 = vsel %vm71, %v329, 0
    %356 = vmatprep.subr.bf16.mxu0 0
    %357 = vmatpush1.bf16.msra.mxu0 %v349
    %358 = vmatprep.subr.bf16.mxu0 0
    %359 = vmatpush1.bf16.msra.mxu0 %v350
    %360 = vmatprep.subr.bf16.mxu0 0
    %361 = vmatpush1.bf16.msra.mxu0 0
    %362 = vmatprep.subr.bf16.mxu0 0
    %363 = vmatpush1.bf16.msra.mxu0 0
    %364 = vmatprep.subr.bf16.mxu0 0
    %365 = vmatpush1.bf16.msra.mxu0 0
    %366 = vmatprep.subr.bf16.mxu0 0
    %367 = vmatpush1.bf16.msra.mxu0 0
    %368 = vmatprep.subr.bf16.mxu0 0
    %369 = vmatpush1.bf16.msra.mxu0 0
    %370 = vmatprep.subr.bf16.mxu0 0
    %371 = vmatpush1.bf16.msra.mxu0 0
    %372 = vmatprep.subr.bf16.mxu0 0
    %373 = vmatpush1.bf16.msra.mxu0 0
    %374 = vmatprep.subr.bf16.mxu0 0
    %375 = vmatpush1.bf16.msra.mxu0 0
    %376 = vmatprep.subr.bf16.mxu0 0
    %377 = vmatpush1.bf16.msra.mxu0 0
    %378 = vmatprep.subr.bf16.mxu0 0
    %379 = vmatpush1.bf16.msra.mxu0 0
    %380 = vmatprep.subr.bf16.mxu0 0
    %381 = vmatpush1.bf16.msra.mxu0 0
    %382 = vmatprep.subr.bf16.mxu0 0
    %383 = vmatpush1.bf16.msra.mxu0 0
    %384 = vmatprep.subr.bf16.mxu0 0
    %385 = vmatpush1.bf16.msra.mxu0 0
    %386 = vmatprep.subr.bf16.mxu0 0
    %387 = vmatpush1.bf16.msra.mxu0 0
    %388 = vmatprep.mubr.bf16.mxu0 0
    %389 = vmatmul.mubr.bf16.gmra.mrb[0].mxu0 %v354
    %v390 = vpop.f32.mrb[0].mxu0
    %v391 = vadd.f32 %v339, %v390
    %v392 = vpop.f32.mrb[0].mxu0
    %v393 = vpop.f32.mrb[0].mxu0
    %v394 = vpop.f32.mrb[0].mxu0
    %395 = vdwg.mxu0
    %v396 = vmax.f32 %v391, 0.0
    %v397 = vpack.c.bf16 %v396, %v396
    %v398 = vld [vmem:[%s11] sm:$0xf]
    %v399 = vld [vmem:[%s11 + $0x4] sm:$0xf]
    %v400 = vld [vmem:[%s11 + $0x8] sm:$0xf]
    %v401 = vld [vmem:[%s11 + $0xc] sm:$0xf]
    %v402 = vld [vmem:[%s11 + $0x10] sm:$0xf]
    %v403 = vld [vmem:[%s11 + $0x14] sm:$0xf]
    %v404 = vld [vmem:[%s11 + $0x18] sm:$0xf]
    %v405 = vld [vmem:[%s11 + $0x1c] sm:$0xf]
    %v406 = vld [vmem:[%s12] sm:$0x1]
    %v408 = vlaneseq
    %v409 = vshrl.u32 %v408, 7
    %v410 = vsub.s32 0, %v409
    %v411 = vrot.slane %v406, %v410
    %v421 = vunpack.c.l.b16 %v398
    %v422 = vunpack.c.l.b16 %v399
    %v423 = vunpack.c.l.b16 %v400
    %v424 = vunpack.c.l.b16 %v401
    %v425 = vunpack.c.l.b16 %v402
    %v426 = vunpack.c.l.b16 %v403
    %v427 = vunpack.c.l.b16 %v404
    %v428 = vunpack.c.l.b16 %v405
    %v429 = vpack.c.b16 %v422, %v421
    %v430 = vpack.c.b16 %v424, %v423
    %v431 = vpack.c.b16 %v426, %v425
    %v432 = vpack.c.b16 %v428, %v427
    %v438 = vsel %vm156, %v397, 0
    %440 = vmatprep.subr.bf16.mxu0 0
    %441 = vmatpush1.bf16.msra.mxu0 %v429
    %442 = vmatprep.subr.bf16.mxu0 0
    %443 = vmatpush1.bf16.msra.mxu0 %v430
    %444 = vmatprep.subr.bf16.mxu0 0
    %445 = vmatpush1.bf16.msra.mxu0 %v431
    %446 = vmatprep.subr.bf16.mxu0 0
    %447 = vmatpush1.bf16.msra.mxu0 %v432
    %448 = vmatprep.subr.bf16.mxu0 0
    %449 = vmatpush1.bf16.msra.mxu0 0
    %450 = vmatprep.subr.bf16.mxu0 0
    %451 = vmatpush1.bf16.msra.mxu0 0
    %452 = vmatprep.subr.bf16.mxu0 0
    %453 = vmatpush1.bf16.msra.mxu0 0
    %454 = vmatprep.subr.bf16.mxu0 0
    %455 = vmatpush1.bf16.msra.mxu0 0
    %456 = vmatprep.subr.bf16.mxu0 0
    %457 = vmatpush1.bf16.msra.mxu0 0
    %458 = vmatprep.subr.bf16.mxu0 0
    %459 = vmatpush1.bf16.msra.mxu0 0
    %460 = vmatprep.subr.bf16.mxu0 0
    %461 = vmatpush1.bf16.msra.mxu0 0
    %462 = vmatprep.subr.bf16.mxu0 0
    %463 = vmatpush1.bf16.msra.mxu0 0
    %464 = vmatprep.subr.bf16.mxu0 0
    %465 = vmatpush1.bf16.msra.mxu0 0
    %466 = vmatprep.subr.bf16.mxu0 0
    %467 = vmatpush1.bf16.msra.mxu0 0
    %468 = vmatprep.subr.bf16.mxu0 0
    %469 = vmatpush1.bf16.msra.mxu0 0
    %470 = vmatprep.subr.bf16.mxu0 0
    %471 = vmatpush1.bf16.msra.mxu0 0
    %472 = vmatprep.mubr.bf16.mxu0 0
    %473 = vmatmul.mubr.bf16.gmra.mrb[0].mxu0 %v438
    %v474 = vpop.f32.mrb[0].mxu0
    %v475 = vadd.f32 %v411, %v474
    %v476 = vpop.f32.mrb[0].mxu0
    %v477 = vpop.f32.mrb[0].mxu0
    %v478 = vpop.f32.mrb[0].mxu0
    %479 = vdwg.mxu0
    %480 = vst.msk [vmem:[#allocation2] sm:$0xff] %vm71, %v475
    // Predicated region
    $region54: #{tpu_custom_call.1} parent=1 // pred_check
      _
    $region55: #{tpu_custom_call.1} parent=1 // pred_check_branch
      %482 = sbr.rel (0) target = $region57
    $region56: #{tpu_custom_call.1} parent=1 // pred_region
      %s484 = ssub.s32 128, 128
      %485 = vsyncadd [#allocation3], %s484
      %s487 = sshll.u32 [#allocation2], 4
      %s488 = int_to_ptr.vmem [resolvable:$true] %s487
      %490 = dma.vmem_to_hbm [thread:$0]  %s488, 128, %s13, [#allocation3]
    $region57: #{tpu_custom_call.1} parent=1 // pred_fallthru
      _
    // Predicated region
    $region58: #{tpu_custom_call.1} parent=1 // pred_check
      _
    $region59: #{tpu_custom_call.1} parent=1 // pred_check_branch
      %492 = sbr.rel (0) target = $region61
    $region60: #{tpu_custom_call.1} parent=1 // pred_region
      %493 = dma.done [#allocation3], 128
    $region61: #{tpu_custom_call.1} parent=1 // pred_fallthru
      _
    %494 = vsyncpa [#allocation3], 1

</llo_original>
